<compile_context>
chip_gen: v7x
topology: tpu7x:2x2x1
jax: 0.10.0
libtpu: 0.0.40
codegen_flags: <defaults>
</compile_context>

<pallas_src>
import jax
import jax.numpy as jnp
from jax.experimental import pallas as pl
from jax.experimental.pallas import tpu as pltpu


def _coord_kernel(x_ref, w1_ref, b1_ref, wh_ref, bh_ref, ww_ref, bw_ref,
                  ph_ref, pw_ref, eh_ref, ew_ref, out_ref):
    """One grid step = nb whole samples: rows = nb*C, lanes = S = H*W."""
    x = x_ref[...]                                                    # (R, S)

    # --- coordinate pooling: one full-width MXU matmul per branch ----------
    x_h = jnp.dot(x, ph_ref[...], preferred_element_type=jnp.float32)  # (R, H)
    x_w = jnp.dot(x, pw_ref[...], preferred_element_type=jnp.float32)  # (R, W)

    # --- conv1 (+folded eval-BN) + h_swish: block-diag weights => single dot
    yh = jnp.dot(w1_ref[...], x_h, preferred_element_type=jnp.float32) + b1_ref[...]
    yw = jnp.dot(w1_ref[...], x_w, preferred_element_type=jnp.float32) + b1_ref[...]
    yh = yh * (jnp.clip(yh + 3.0, 0.0, 6.0) * (1.0 / 6.0))             # h_swish
    yw = yw * (jnp.clip(yw + 3.0, 0.0, 6.0) * (1.0 / 6.0))

    # --- conv_h / conv_w + sigmoid (block-diagonal, single matmul each) ----
    a_h = jax.nn.sigmoid(
        jnp.dot(wh_ref[...], yh, preferred_element_type=jnp.float32) + bh_ref[...])
    a_w = jax.nn.sigmoid(
        jnp.dot(ww_ref[...], yw, preferred_element_type=jnp.float32) + bw_ref[...])

    # --- expand attention back to the lane-dense slab and apply ------------
    att = (jnp.dot(a_h, eh_ref[...], preferred_element_type=jnp.float32) *
           jnp.dot(a_w, ew_ref[...], preferred_element_type=jnp.float32))   # (R, S)
    out_ref[...] = (x * att).astype(out_ref.dtype)


def _vmem_capacity_bytes():
    try:
        info = pltpu.get_tpu_info()
        cap = getattr(info, "vmem_capacity_bytes", None)
        if cap:
            return int(cap)
    except Exception:
        pass
    return 64 << 20          # conservative fallback (v7x per-TensorCore VMEM)


def _pick_block_batch(n, c, s, h, w, mip, vmem_phys):
    """Largest per-step sample count nb that fits the real VMEM budget."""
    headroom = 12 << 20
    budget = max(16 << 20, min(vmem_phys - headroom, 100 << 20))
    const_bytes = 2 * (2 * s * (h + w) * 4)       # pool/expand mats, 2 buffers each

    def usage(d):
        rows = d * c
        xout = 16 * rows * s                      # x + out, double-buffered, f32
        wbd = 24 * d * d * mip * c                # block-diag conv weights, 2 buffers
        interm = 8 * rows * s                     # attention / apply intermediates
        return xout + wbd + interm + const_bytes

    def valid(d):                                 # (8,128) sublane rule on the row block
        return n % d == 0 and ((d * c) % 8 == 0 or d == n)

    cands = [d for d in range(1, n + 1) if valid(d)]
    # Prefer blocks where the block-diag weight traffic stays small vs. x traffic.
    pool = [d for d in cands if usage(d) <= budget and 3 * d * mip <= s]
    if not pool:
        pool = [d for d in cands if usage(d) <= budget]
    if not pool:
        # TODO(synk): add an S/C-blocked fallback for feature maps too large to
        # fit one sample in VMEM; for now take the smallest legal block.
        pool = cands[:1]
    even = [d for d in pool if (n // d) >= 2 and (n // d) % 2 == 0]
    multi = [d for d in pool if (n // d) >= 2]
    nb = max(even or multi or pool)
    return nb, usage(nb)


def coordinate_module(x, params):
    """x: (N, C, H, W) float32.  params: dict of weights (see init_params)."""
    n, c, h, w = x.shape
    s = h * w
    mip = params["w1"].shape[0]
    dt = x.dtype

    # Fold eval-mode BN and the conv1 bias into the conv1 weights (exact).
    w1f = params["bn_scale"] * params["w1"]                        # (MIP, C)
    b1f = params["bn_scale"] * params["b1"] + params["bn_shift"]   # (MIP, 1)

    # Tiny constant pooling / expansion matrices (built once, outside the kernel).
    eh = jnp.repeat(jnp.eye(h, dtype=dt), w, axis=1)   # (H, S): eh[h, h*W+w] = 1
    ew = jnp.tile(jnp.eye(w, dtype=dt), (1, h))        # (W, S): ew[w, h*W+w] = 1
    ph = eh.T / w                                      # (S, H): mean over W
    pw = ew.T / h                                      # (S, W): mean over H

    # Lane-dense slab: batch folded into the sublane axis (free XLA reshape).
    x2 = x.reshape(n * c, s)

    vmem_phys = _vmem_capacity_bytes()
    nb, usage = _pick_block_batch(n, c, s, h, w, mip, vmem_phys)
    rows = nb * c
    vmem_limit = int(min(vmem_phys - (4 << 20), max(usage + (16 << 20), 32 << 20)))

    # Block-diagonal (over the nb samples of one grid block) conv weights so
    # conv1 / conv_h / conv_w are each a single 2-D MXU matmul.
    eye_nb = jnp.eye(nb, dtype=dt)
    w1bd = jnp.kron(eye_nb, w1f)                       # (nb*MIP, nb*C)
    whbd = jnp.kron(eye_nb, params["wh"])              # (nb*C,  nb*MIP)
    wwbd = jnp.kron(eye_nb, params["ww"])              # (nb*C,  nb*MIP)
    b1t = jnp.tile(b1f, (nb, 1))                       # (nb*MIP, 1)
    bht = jnp.tile(params["bh"], (nb, 1))              # (nb*C,  1)
    bwt = jnp.tile(params["bw"], (nb, 1))              # (nb*C,  1)

    def cspec(shape):                                  # constant (grid-invariant) operand
        return pl.BlockSpec(shape, lambda i, _s=shape: (0,) * len(_s))

    out2 = pl.pallas_call(
        _coord_kernel,
        out_shape=jax.ShapeDtypeStruct((n * c, s), dt),
        grid=(n // nb,),
        in_specs=[
            pl.BlockSpec((rows, s), lambda i: (i, 0)),   # x slab
            cspec((nb * mip, rows)),                     # conv1 (BN folded, block-diag)
            cspec((nb * mip, 1)),                        # conv1 bias (folded, tiled)
            cspec((rows, nb * mip)),                     # conv_h weight (block-diag)
            cspec((rows, 1)),                            # conv_h bias
            cspec((rows, nb * mip)),                     # conv_w weight (block-diag)
            cspec((rows, 1)),                            # conv_w bias
            cspec((s, h)),                               # pool-over-W matrix
            cspec((s, w)),                               # pool-over-H matrix
            cspec((h, s)),                               # expand-h matrix
            cspec((w, s)),                               # expand-w matrix
        ],
        out_specs=pl.BlockSpec((rows, s), lambda i: (i, 0)),
        compiler_params=pltpu.CompilerParams(
            dimension_semantics=("parallel",),
            vmem_limit_bytes=vmem_limit),
    )(x2, w1bd, b1t, whbd, bht, wwbd, bwt, ph, pw, eh, ew)

    return out2.reshape(n, c, h, w)


def init_params(key, inp, reduction=32):
    mip = max(8, inp // reduction)
    ks = jax.random.split(key, 6)
    w1 = jax.random.normal(ks[0], (mip, inp), jnp.float32) * 0.2
    b1 = jax.random.normal(ks[1], (mip, 1), jnp.float32) * 0.1
    wh = jax.random.normal(ks[2], (inp, mip), jnp.float32) * 0.2
    bh = jax.random.normal(ks[3], (inp, 1), jnp.float32) * 0.1
    ww = jax.random.normal(ks[4], (inp, mip), jnp.float32) * 0.2
    bw = jax.random.normal(ks[5], (inp, 1), jnp.float32) * 0.1
    # BatchNorm eval-mode parameters (PyTorch defaults).
    gamma = jnp.ones((mip, 1), jnp.float32)
    beta = jnp.zeros((mip, 1), jnp.float32)
    run_mean = jnp.zeros((mip, 1), jnp.float32)
    run_var = jnp.ones((mip, 1), jnp.float32)
    eps = 1e-5
    bn_scale = gamma / jnp.sqrt(run_var + eps)
    bn_shift = beta - run_mean * bn_scale
    return dict(w1=w1, b1=b1, bn_scale=bn_scale, bn_shift=bn_shift,
                wh=wh, bh=bh, ww=ww, bw=bw)


def coordinate_module_ref(x, params):
    """Plain-JAX reference mirroring the PyTorch forward (eval-mode BN)."""
    n, c, h, w = x.shape
    x_h = jnp.mean(x, axis=3)                      # (N, C, H)
    x_w = jnp.mean(x, axis=2)                      # (N, C, W)
    y = jnp.concatenate([x_h, x_w], axis=2)        # (N, C, H+W)
    y1 = jnp.einsum("mc,nck->nmk", params["w1"], y,
                    precision="highest") + params["b1"][None]
    y1 = y1 * params["bn_scale"][None] + params["bn_shift"][None]
    y1 = y1 * (jnp.clip(y1 + 3.0, 0.0, 6.0) / 6.0)
    yh, yw = y1[:, :, :h], y1[:, :, h:]
    a_h = jax.nn.sigmoid(jnp.einsum("cm,nmh->nch", params["wh"], yh,
                                    precision="highest") + params["bh"][None])
    a_w = jax.nn.sigmoid(jnp.einsum("cm,nmw->ncw", params["ww"], yw,
                                    precision="highest") + params["bw"][None])
    return x * a_h[:, :, :, None] * a_w[:, :, None, :]


if __name__ == "__main__":
    key = jax.random.PRNGKey(0)
    k_x, k_p = jax.random.split(key)

    N, C, H, W = 2, 4, 16, 16
    x = jax.random.normal(k_x, (N, C, H, W), jnp.float32)
    params = init_params(k_p, inp=C, reduction=32)

    out = coordinate_module(x, params)
    out = jax.block_until_ready(out)

    ref = coordinate_module_ref(x, params)
    assert out.shape == (N, C, H, W)
    assert jnp.allclose(out, ref, atol=1e-4, rtol=1e-4), "mismatch vs JAX reference"

    print("KERNEL_OK")
</pallas_src>

<mosaic_0001>
module attributes {stable_mosaic.version = 11 : i64} {
  func.func @_coord_kernel(%arg0: i32, %arg1: memref<8x256xf32, #tpu.memory_space<vmem>>, %arg2: memref<16x8xf32, #tpu.memory_space<vmem>>, %arg3: memref<16x1xf32, #tpu.memory_space<vmem>>, %arg4: memref<8x16xf32, #tpu.memory_space<vmem>>, %arg5: memref<8x1xf32, #tpu.memory_space<vmem>>, %arg6: memref<8x16xf32, #tpu.memory_space<vmem>>, %arg7: memref<8x1xf32, #tpu.memory_space<vmem>>, %arg8: memref<256x16xf32, #tpu.memory_space<vmem>>, %arg9: memref<256x16xf32, #tpu.memory_space<vmem>>, %arg10: memref<16x256xf32, #tpu.memory_space<vmem>>, %arg11: memref<16x256xf32, #tpu.memory_space<vmem>>, %arg12: memref<8x256xf32, #tpu.memory_space<vmem>>) attributes {dimension_semantics = [#tpu.dimension_semantics<parallel>], iteration_bounds = array<i64: 1>, scalar_prefetch = 0 : i64, scratch_operands = 0 : i64, tpu.core_type = #tpu.core_type<tc>, window_params = [{transform_indices = @transform_0, window_bounds = array<i64: 8, 256>}, {pipeline_mode = #tpu.pipeline_mode<synchronous>, transform_indices = @transform_1, window_bounds = array<i64: 16, 8>}, {pipeline_mode = #tpu.pipeline_mode<synchronous>, transform_indices = @transform_2, window_bounds = array<i64: 16, 1>}, {pipeline_mode = #tpu.pipeline_mode<synchronous>, transform_indices = @transform_3, window_bounds = array<i64: 8, 16>}, {pipeline_mode = #tpu.pipeline_mode<synchronous>, transform_indices = @transform_4, window_bounds = array<i64: 8, 1>}, {pipeline_mode = #tpu.pipeline_mode<synchronous>, transform_indices = @transform_5, window_bounds = array<i64: 8, 16>}, {pipeline_mode = #tpu.pipeline_mode<synchronous>, transform_indices = @transform_6, window_bounds = array<i64: 8, 1>}, {pipeline_mode = #tpu.pipeline_mode<synchronous>, transform_indices = @transform_7, window_bounds = array<i64: 256, 16>}, {pipeline_mode = #tpu.pipeline_mode<synchronous>, transform_indices = @transform_8, window_bounds = array<i64: 256, 16>}, {pipeline_mode = #tpu.pipeline_mode<synchronous>, transform_indices = @transform_9, window_bounds = array<i64: 16, 256>}, {pipeline_mode = #tpu.pipeline_mode<synchronous>, transform_indices = @transform_10, window_bounds = array<i64: 16, 256>}, {transform_indices = @transform_11, window_bounds = array<i64: 8, 256>}]} {
    %c0 = arith.constant 0 : index
    %c0_0 = arith.constant 0 : index
    %0 = vector.load %arg1[%c0, %c0_0] : memref<8x256xf32, #tpu.memory_space<vmem>>, vector<8x256xf32>
    %c0_1 = arith.constant 0 : index
    %c0_2 = arith.constant 0 : index
    %1 = vector.load %arg8[%c0_1, %c0_2] : memref<256x16xf32, #tpu.memory_space<vmem>>, vector<256x16xf32>
    %cst = arith.constant dense<0.000000e+00> : vector<8x16xf32>
    %2 = tpu.matmul %0, %1, %cst {dimension_numbers = #tpu.dot_dimension_numbers<[1], [0], [0], [1], [0, 0, 1, 1], [], []>} : vector<8x256xf32>, vector<256x16xf32>, vector<8x16xf32> -> vector<8x16xf32>
    %c0_3 = arith.constant 0 : index
    %c0_4 = arith.constant 0 : index
    %3 = vector.load %arg9[%c0_3, %c0_4] : memref<256x16xf32, #tpu.memory_space<vmem>>, vector<256x16xf32>
    %cst_5 = arith.constant dense<0.000000e+00> : vector<8x16xf32>
    %4 = tpu.matmul %0, %3, %cst_5 {dimension_numbers = #tpu.dot_dimension_numbers<[1], [0], [0], [1], [0, 0, 1, 1], [], []>} : vector<8x256xf32>, vector<256x16xf32>, vector<8x16xf32> -> vector<8x16xf32>
    %c0_6 = arith.constant 0 : index
    %c0_7 = arith.constant 0 : index
    %5 = vector.load %arg2[%c0_6, %c0_7] : memref<16x8xf32, #tpu.memory_space<vmem>>, vector<16x8xf32>
    %cst_8 = arith.constant dense<0.000000e+00> : vector<16x16xf32>
    %6 = tpu.matmul %5, %2, %cst_8 {dimension_numbers = #tpu.dot_dimension_numbers<[1], [0], [0], [1], [0, 0, 1, 1], [], []>} : vector<16x8xf32>, vector<8x16xf32>, vector<16x16xf32> -> vector<16x16xf32>
    %c0_9 = arith.constant 0 : index
    %c0_10 = arith.constant 0 : index
    %7 = vector.load %arg3[%c0_9, %c0_10] : memref<16x1xf32, #tpu.memory_space<vmem>>, vector<16x1xf32>
    %8 = vector.broadcast %7 : vector<16x1xf32> to vector<16x16xf32>
    %9 = arith.addf %6, %8 : vector<16x16xf32>
    %c0_11 = arith.constant 0 : index
    %c0_12 = arith.constant 0 : index
    %10 = vector.load %arg2[%c0_11, %c0_12] : memref<16x8xf32, #tpu.memory_space<vmem>>, vector<16x8xf32>
    %cst_13 = arith.constant dense<0.000000e+00> : vector<16x16xf32>
    %11 = tpu.matmul %10, %4, %cst_13 {dimension_numbers = #tpu.dot_dimension_numbers<[1], [0], [0], [1], [0, 0, 1, 1], [], []>} : vector<16x8xf32>, vector<8x16xf32>, vector<16x16xf32> -> vector<16x16xf32>
    %c0_14 = arith.constant 0 : index
    %c0_15 = arith.constant 0 : index
    %12 = vector.load %arg3[%c0_14, %c0_15] : memref<16x1xf32, #tpu.memory_space<vmem>>, vector<16x1xf32>
    %13 = vector.broadcast %12 : vector<16x1xf32> to vector<16x16xf32>
    %14 = arith.addf %11, %13 : vector<16x16xf32>
    %cst_16 = arith.constant 3.000000e+00 : f32
    %15 = vector.broadcast %cst_16 : f32 to vector<16x16xf32>
    %16 = arith.addf %9, %15 : vector<16x16xf32>
    %cst_17 = arith.constant 0.000000e+00 : f32
    %cst_18 = arith.constant 6.000000e+00 : f32
    %17 = vector.broadcast %cst_17 : f32 to vector<16x16xf32>
    %18 = arith.maximumf %17, %16 : vector<16x16xf32>
    %19 = vector.broadcast %cst_18 : f32 to vector<16x16xf32>
    %20 = arith.minimumf %19, %18 : vector<16x16xf32>
    %cst_19 = arith.constant 0.166666672 : f32
    %21 = vector.broadcast %cst_19 : f32 to vector<16x16xf32>
    %22 = arith.mulf %20, %21 : vector<16x16xf32>
    %23 = arith.mulf %9, %22 : vector<16x16xf32>
    %cst_20 = arith.constant 3.000000e+00 : f32
    %24 = vector.broadcast %cst_20 : f32 to vector<16x16xf32>
    %25 = arith.addf %14, %24 : vector<16x16xf32>
    %cst_21 = arith.constant 0.000000e+00 : f32
    %cst_22 = arith.constant 6.000000e+00 : f32
    %26 = vector.broadcast %cst_21 : f32 to vector<16x16xf32>
    %27 = arith.maximumf %26, %25 : vector<16x16xf32>
    %28 = vector.broadcast %cst_22 : f32 to vector<16x16xf32>
    %29 = arith.minimumf %28, %27 : vector<16x16xf32>
    %cst_23 = arith.constant 0.166666672 : f32
    %30 = vector.broadcast %cst_23 : f32 to vector<16x16xf32>
    %31 = arith.mulf %29, %30 : vector<16x16xf32>
    %32 = arith.mulf %14, %31 : vector<16x16xf32>
    %c0_24 = arith.constant 0 : index
    %c0_25 = arith.constant 0 : index
    %33 = vector.load %arg4[%c0_24, %c0_25] : memref<8x16xf32, #tpu.memory_space<vmem>>, vector<8x16xf32>
    %cst_26 = arith.constant dense<0.000000e+00> : vector<8x16xf32>
    %34 = tpu.matmul %33, %23, %cst_26 {dimension_numbers = #tpu.dot_dimension_numbers<[1], [0], [0], [1], [0, 0, 1, 1], [], []>} : vector<8x16xf32>, vector<16x16xf32>, vector<8x16xf32> -> vector<8x16xf32>
    %c0_27 = arith.constant 0 : index
    %c0_28 = arith.constant 0 : index
    %35 = vector.load %arg5[%c0_27, %c0_28] : memref<8x1xf32, #tpu.memory_space<vmem>>, vector<8x1xf32>
    %36 = vector.broadcast %35 : vector<8x1xf32> to vector<8x16xf32>
    %37 = arith.addf %34, %36 : vector<8x16xf32>
    %38 = arith.negf %37 : vector<8x16xf32>
    %39 = math.exp %38 : vector<8x16xf32>
    %cst_29 = arith.constant 1.000000e+00 : f32
    %40 = vector.broadcast %cst_29 : f32 to vector<8x16xf32>
    %41 = arith.addf %40, %39 : vector<8x16xf32>
    %42 = arith.divf %40, %41 : vector<8x16xf32>
    %c0_30 = arith.constant 0 : index
    %c0_31 = arith.constant 0 : index
    %43 = vector.load %arg6[%c0_30, %c0_31] : memref<8x16xf32, #tpu.memory_space<vmem>>, vector<8x16xf32>
    %cst_32 = arith.constant dense<0.000000e+00> : vector<8x16xf32>
    %44 = tpu.matmul %43, %32, %cst_32 {dimension_numbers = #tpu.dot_dimension_numbers<[1], [0], [0], [1], [0, 0, 1, 1], [], []>} : vector<8x16xf32>, vector<16x16xf32>, vector<8x16xf32> -> vector<8x16xf32>
    %c0_33 = arith.constant 0 : index
    %c0_34 = arith.constant 0 : index
    %45 = vector.load %arg7[%c0_33, %c0_34] : memref<8x1xf32, #tpu.memory_space<vmem>>, vector<8x1xf32>
    %46 = vector.broadcast %45 : vector<8x1xf32> to vector<8x16xf32>
    %47 = arith.addf %44, %46 : vector<8x16xf32>
    %48 = arith.negf %47 : vector<8x16xf32>
    %49 = math.exp %48 : vector<8x16xf32>
    %cst_35 = arith.constant 1.000000e+00 : f32
    %50 = vector.broadcast %cst_35 : f32 to vector<8x16xf32>
    %51 = arith.addf %50, %49 : vector<8x16xf32>
    %52 = arith.divf %50, %51 : vector<8x16xf32>
    %c0_36 = arith.constant 0 : index
    %c0_37 = arith.constant 0 : index
    %53 = vector.load %arg10[%c0_36, %c0_37] : memref<16x256xf32, #tpu.memory_space<vmem>>, vector<16x256xf32>
    %cst_38 = arith.constant dense<0.000000e+00> : vector<8x256xf32>
    %54 = tpu.matmul %42, %53, %cst_38 {dimension_numbers = #tpu.dot_dimension_numbers<[1], [0], [0], [1], [0, 0, 1, 1], [], []>} : vector<8x16xf32>, vector<16x256xf32>, vector<8x256xf32> -> vector<8x256xf32>
    %c0_39 = arith.constant 0 : index
    %c0_40 = arith.constant 0 : index
    %55 = vector.load %arg11[%c0_39, %c0_40] : memref<16x256xf32, #tpu.memory_space<vmem>>, vector<16x256xf32>
    %cst_41 = arith.constant dense<0.000000e+00> : vector<8x256xf32>
    %56 = tpu.matmul %52, %55, %cst_41 {dimension_numbers = #tpu.dot_dimension_numbers<[1], [0], [0], [1], [0, 0, 1, 1], [], []>} : vector<8x16xf32>, vector<16x256xf32>, vector<8x256xf32> -> vector<8x256xf32>
    %57 = arith.mulf %54, %56 : vector<8x256xf32>
    %58 = arith.mulf %0, %57 : vector<8x256xf32>
    %c0_42 = arith.constant 0 : index
    %c0_43 = arith.constant 0 : index
    %59 = vector.load %arg12[%c0_42, %c0_43] : memref<8x256xf32, #tpu.memory_space<vmem>>, vector<8x256xf32>
    tpu.vector_store %arg12[%c0_42, %c0_43], %58 {strides = array<i32>} : memref<8x256xf32, #tpu.memory_space<vmem>>, vector<8x256xf32>,
    return
  }
  func.func @transform_0(%arg0: i32) -> (i32, i32) {
    %c0_i32 = arith.constant 0 : i32
    %c0_i32_0 = arith.constant 0 : i32
    return %arg0, %c0_i32 : i32, i32
  }
  func.func @transform_1(%arg0: i32) -> (i32, i32) {
    %c0_i32 = arith.constant 0 : i32
    %c0_i32_0 = arith.constant 0 : i32
    %c0_i32_1 = arith.constant 0 : i32
    return %c0_i32, %c0_i32_0 : i32, i32
  }
  func.func @transform_2(%arg0: i32) -> (i32, i32) {
    %c0_i32 = arith.constant 0 : i32
    %c0_i32_0 = arith.constant 0 : i32
    %c0_i32_1 = arith.constant 0 : i32
    return %c0_i32, %c0_i32_0 : i32, i32
  }
  func.func @transform_3(%arg0: i32) -> (i32, i32) {
    %c0_i32 = arith.constant 0 : i32
    %c0_i32_0 = arith.constant 0 : i32
    %c0_i32_1 = arith.constant 0 : i32
    return %c0_i32, %c0_i32_0 : i32, i32
  }
  func.func @transform_4(%arg0: i32) -> (i32, i32) {
    %c0_i32 = arith.constant 0 : i32
    %c0_i32_0 = arith.constant 0 : i32
    %c0_i32_1 = arith.constant 0 : i32
    return %c0_i32, %c0_i32_0 : i32, i32
  }
  func.func @transform_5(%arg0: i32) -> (i32, i32) {
    %c0_i32 = arith.constant 0 : i32
    %c0_i32_0 = arith.constant 0 : i32
    %c0_i32_1 = arith.constant 0 : i32
    return %c0_i32, %c0_i32_0 : i32, i32
  }
  func.func @transform_6(%arg0: i32) -> (i32, i32) {
    %c0_i32 = arith.constant 0 : i32
    %c0_i32_0 = arith.constant 0 : i32
    %c0_i32_1 = arith.constant 0 : i32
    return %c0_i32, %c0_i32_0 : i32, i32
  }
  func.func @transform_7(%arg0: i32) -> (i32, i32) {
    %c0_i32 = arith.constant 0 : i32
    %c0_i32_0 = arith.constant 0 : i32
    %c0_i32_1 = arith.constant 0 : i32
    return %c0_i32, %c0_i32_0 : i32, i32
  }
  func.func @transform_8(%arg0: i32) -> (i32, i32) {
    %c0_i32 = arith.constant 0 : i32
    %c0_i32_0 = arith.constant 0 : i32
    %c0_i32_1 = arith.constant 0 : i32
    return %c0_i32, %c0_i32_0 : i32, i32
  }
  func.func @transform_9(%arg0: i32) -> (i32, i32) {
    %c0_i32 = arith.constant 0 : i32
    %c0_i32_0 = arith.constant 0 : i32
    %c0_i32_1 = arith.constant 0 : i32
    return %c0_i32, %c0_i32_0 : i32, i32
  }
  func.func @transform_10(%arg0: i32) -> (i32, i32) {
    %c0_i32 = arith.constant 0 : i32
    %c0_i32_0 = arith.constant 0 : i32
    %c0_i32_1 = arith.constant 0 : i32
    return %c0_i32, %c0_i32_0 : i32, i32
  }
  func.func @transform_11(%arg0: i32) -> (i32, i32) {
    %c0_i32 = arith.constant 0 : i32
    %c0_i32_0 = arith.constant 0 : i32
    return %arg0, %c0_i32 : i32, i32
  }
}

</mosaic_0001>

<llo_original>
// kernel: tpu_custom_call.1
$region0: #{tpu_custom_call.1}
  #allocation0 [shape = 'u32[]', space=smem, size = 0x4, offset = 0x4, fixed_abs, tag = 'smem constant byte address 0x4 - core index']
  #allocation1 [shape = 'u32[144,128]{1,0:T(1,128)}', space=vmem, size = 0x12000, scoped, tag = 'internal scratch']
  %s0 = inlined_call_operand.vmem [shape: f32[8,256], index: 0, kind: input, shape index: {}]
  %s1 = inlined_call_operand.vmem [shape: f32[16,8], index: 1, kind: input, shape index: {}]
  %s2 = inlined_call_operand.vmem [shape: f32[16,1], index: 2, kind: input, shape index: {}]
  %s3 = inlined_call_operand.vmem [shape: f32[8,16], index: 3, kind: input, shape index: {}]
  %s4 = inlined_call_operand.vmem [shape: f32[8,1], index: 4, kind: input, shape index: {}]
  %s5 = inlined_call_operand.vmem [shape: f32[8,16], index: 5, kind: input, shape index: {}]
  %s6 = inlined_call_operand.vmem [shape: f32[8,1], index: 6, kind: input, shape index: {}]
  %s7 = inlined_call_operand.vmem [shape: f32[256,16], index: 7, kind: input, shape index: {}]
  %s8 = inlined_call_operand.vmem [shape: f32[256,16], index: 8, kind: input, shape index: {}]
  %s9 = inlined_call_operand.vmem [shape: f32[16,256], index: 9, kind: input, shape index: {}]
  %s10 = inlined_call_operand.vmem [shape: f32[16,256], index: 10, kind: input, shape index: {}]
  %s11 = inlined_call_operand.hbm [shape: f32[8,256], index: 11, kind: output, shape index: {}]
  %s12 = sld [smem:[#allocation0]]
  $region54: #{tpu_custom_call.1} parent=0
    _
  %s14 = ssub.s32 1, %s12
  %s15 = scalar_select 0, %s14, %s12
  $region1: #{tpu_custom_call.1} parent=0
    #allocation2 [shape = 'u8[8192]{0}', space=vmem, size = 0x2000, scoped, tag = 'output window, operand 0, single buffered']
    #allocation3 [shape = 's32[1]{0}', space=sflag, size = 0x4, scoped, tag = 'scoped memory for tpu_custom_call.1']
    %16 = vsyncpa [#allocation3], 0
    // Predicated region
    $region2: #{tpu_custom_call.1} parent=1 // pred_check
      _
    $region3: #{tpu_custom_call.1} parent=1 // pred_check_branch
      %18 = sbr.rel (0) target = $region5
    $region4: #{tpu_custom_call.1} parent=1 // pred_region
      _
    $region5: #{tpu_custom_call.1} parent=1 // pred_fallthru
      _
    // Predicated region
    $region6: #{tpu_custom_call.1} parent=1 // pred_check
      _
    $region7: #{tpu_custom_call.1} parent=1 // pred_check_branch
      %20 = sbr.rel (0) target = $region9
    $region8: #{tpu_custom_call.1} parent=1 // pred_region
      _
    $region9: #{tpu_custom_call.1} parent=1 // pred_fallthru
      _
    // Predicated region
    $region10: #{tpu_custom_call.1} parent=1 // pred_check
      _
    $region11: #{tpu_custom_call.1} parent=1 // pred_check_branch
      %22 = sbr.rel (0) target = $region13
    $region12: #{tpu_custom_call.1} parent=1 // pred_region
      _
    $region13: #{tpu_custom_call.1} parent=1 // pred_fallthru
      _
    // Predicated region
    $region14: #{tpu_custom_call.1} parent=1 // pred_check
      _
    $region15: #{tpu_custom_call.1} parent=1 // pred_check_branch
      %24 = sbr.rel (0) target = $region17
    $region16: #{tpu_custom_call.1} parent=1 // pred_region
      _
    $region17: #{tpu_custom_call.1} parent=1 // pred_fallthru
      _
    // Predicated region
    $region18: #{tpu_custom_call.1} parent=1 // pred_check
      _
    $region19: #{tpu_custom_call.1} parent=1 // pred_check_branch
      %26 = sbr.rel (0) target = $region21
    $region20: #{tpu_custom_call.1} parent=1 // pred_region
      _
    $region21: #{tpu_custom_call.1} parent=1 // pred_fallthru
      _
    // Predicated region
    $region22: #{tpu_custom_call.1} parent=1 // pred_check
      _
    $region23: #{tpu_custom_call.1} parent=1 // pred_check_branch
      %28 = sbr.rel (0) target = $region25
    $region24: #{tpu_custom_call.1} parent=1 // pred_region
      _
    $region25: #{tpu_custom_call.1} parent=1 // pred_fallthru
      _
    // Predicated region
    $region26: #{tpu_custom_call.1} parent=1 // pred_check
      _
    $region27: #{tpu_custom_call.1} parent=1 // pred_check_branch
      %30 = sbr.rel (0) target = $region29
    $region28: #{tpu_custom_call.1} parent=1 // pred_region
      _
    $region29: #{tpu_custom_call.1} parent=1 // pred_fallthru
      _
    // Predicated region
    $region30: #{tpu_custom_call.1} parent=1 // pred_check
      _
    $region31: #{tpu_custom_call.1} parent=1 // pred_check_branch
      %32 = sbr.rel (0) target = $region33
    $region32: #{tpu_custom_call.1} parent=1 // pred_region
      _
    $region33: #{tpu_custom_call.1} parent=1 // pred_fallthru
      _
    // Predicated region
    $region34: #{tpu_custom_call.1} parent=1 // pred_check
      _
    $region35: #{tpu_custom_call.1} parent=1 // pred_check_branch
      %34 = sbr.rel (0) target = $region37
    $region36: #{tpu_custom_call.1} parent=1 // pred_region
      _
    $region37: #{tpu_custom_call.1} parent=1 // pred_fallthru
      _
    // Predicated region
    $region38: #{tpu_custom_call.1} parent=1 // pred_check
      _
    $region39: #{tpu_custom_call.1} parent=1 // pred_check_branch
      %36 = sbr.rel (0) target = $region41
    $region40: #{tpu_custom_call.1} parent=1 // pred_region
      _
    $region41: #{tpu_custom_call.1} parent=1 // pred_fallthru
      _
    // Predicated region
    $region42: #{tpu_custom_call.1} parent=1 // pred_check
      _
    $region43: #{tpu_custom_call.1} parent=1 // pred_check_branch
      %38 = sbr.rel (0) target = $region45
    $region44: #{tpu_custom_call.1} parent=1 // pred_region
      _
    $region45: #{tpu_custom_call.1} parent=1 // pred_fallthru
      _
    %v39 = vld [vmem:[%s0] sm:$0xff]
    %v40 = vld [vmem:[%s0 + $0x8] sm:$0xff]
    %v41 = vld [vmem:[%s7] sm:$0xff]
    %v42 = vld [vmem:[%s7 + $0x8] sm:$0xff]
    %v43 = vld [vmem:[%s7 + $0x10] sm:$0xff]
    %v44 = vld [vmem:[%s7 + $0x18] sm:$0xff]
    %v45 = vld [vmem:[%s7 + $0x20] sm:$0xff]
    %v46 = vld [vmem:[%s7 + $0x28] sm:$0xff]
    %v47 = vld [vmem:[%s7 + $0x30] sm:$0xff]
    %v48 = vld [vmem:[%s7 + $0x38] sm:$0xff]
    %v49 = vld [vmem:[%s7 + $0x40] sm:$0xff]
    %v50 = vld [vmem:[%s7 + $0x48] sm:$0xff]
    %v51 = vld [vmem:[%s7 + $0x50] sm:$0xff]
    %v52 = vld [vmem:[%s7 + $0x58] sm:$0xff]
    %v53 = vld [vmem:[%s7 + $0x60] sm:$0xff]
    %v54 = vld [vmem:[%s7 + $0x68] sm:$0xff]
    %v55 = vld [vmem:[%s7 + $0x70] sm:$0xff]
    %v56 = vld [vmem:[%s7 + $0x78] sm:$0xff]
    %v57 = vld [vmem:[%s7 + $0x80] sm:$0xff]
    %v58 = vld [vmem:[%s7 + $0x88] sm:$0xff]
    %v59 = vld [vmem:[%s7 + $0x90] sm:$0xff]
    %v60 = vld [vmem:[%s7 + $0x98] sm:$0xff]
    %v61 = vld [vmem:[%s7 + $0xa0] sm:$0xff]
    %v62 = vld [vmem:[%s7 + $0xa8] sm:$0xff]
    %v63 = vld [vmem:[%s7 + $0xb0] sm:$0xff]
    %v64 = vld [vmem:[%s7 + $0xb8] sm:$0xff]
    %v65 = vld [vmem:[%s7 + $0xc0] sm:$0xff]
    %v66 = vld [vmem:[%s7 + $0xc8] sm:$0xff]
    %v67 = vld [vmem:[%s7 + $0xd0] sm:$0xff]
    %v68 = vld [vmem:[%s7 + $0xd8] sm:$0xff]
    %v69 = vld [vmem:[%s7 + $0xe0] sm:$0xff]
    %v70 = vld [vmem:[%s7 + $0xe8] sm:$0xff]
    %v71 = vld [vmem:[%s7 + $0xf0] sm:$0xff]
    %v72 = vld [vmem:[%s7 + $0xf8] sm:$0xff]
    %73 = vmatprep.subr.mxu0 0.0
    %74 = vmatpush1.msra.mxu0 %v41
    %75 = vmatprep.subr.mxu0 0.0
    %76 = vmatpush1.msra.mxu0 %v42
    %77 = vmatprep.subr.mxu0 0.0
    %78 = vmatpush1.msra.mxu0 %v43
    %79 = vmatprep.subr.mxu0 0.0
    %80 = vmatpush1.msra.mxu0 %v44
    %81 = vmatprep.subr.mxu0 0.0
    %82 = vmatpush1.msra.mxu0 %v45
    %83 = vmatprep.subr.mxu0 0.0
    %84 = vmatpush1.msra.mxu0 %v46
    %85 = vmatprep.subr.mxu0 0.0
    %86 = vmatpush1.msra.mxu0 %v47
    %87 = vmatprep.subr.mxu0 0.0
    %88 = vmatpush1.msra.mxu0 %v48
    %89 = vmatprep.subr.mxu0 0.0
    %90 = vmatpush1.msra.mxu0 %v49
    %91 = vmatprep.subr.mxu0 0.0
    %92 = vmatpush1.msra.mxu0 %v50
    %93 = vmatprep.subr.mxu0 0.0
    %94 = vmatpush1.msra.mxu0 %v51
    %95 = vmatprep.subr.mxu0 0.0
    %96 = vmatpush1.msra.mxu0 %v52
    %97 = vmatprep.subr.mxu0 0.0
    %98 = vmatpush1.msra.mxu0 %v53
    %99 = vmatprep.subr.mxu0 0.0
    %100 = vmatpush1.msra.mxu0 %v54
    %101 = vmatprep.subr.mxu0 0.0
    %102 = vmatpush1.msra.mxu0 %v55
    %103 = vmatprep.subr.mxu0 0.0
    %104 = vmatpush1.msra.mxu0 %v56
    %105 = vmatprep.subr.mxu0 0.0
    %106 = vmatpush1.msra.mxu0 %v57
    %107 = vmatprep.subr.mxu0 0.0
    %108 = vmatpush1.msra.mxu0 %v58
    %109 = vmatprep.subr.mxu0 0.0
    %110 = vmatpush1.msra.mxu0 %v59
    %111 = vmatprep.subr.mxu0 0.0
    %112 = vmatpush1.msra.mxu0 %v60
    %113 = vmatprep.subr.mxu0 0.0
    %114 = vmatpush1.msra.mxu0 %v61
    %115 = vmatprep.subr.mxu0 0.0
    %116 = vmatpush1.msra.mxu0 %v62
    %117 = vmatprep.subr.mxu0 0.0
    %118 = vmatpush1.msra.mxu0 %v63
    %119 = vmatprep.subr.mxu0 0.0
    %120 = vmatpush1.msra.mxu0 %v64
    %121 = vmatprep.subr.mxu0 0.0
    %122 = vmatpush1.msra.mxu0 %v65
    %123 = vmatprep.subr.mxu0 0.0
    %124 = vmatpush1.msra.mxu0 %v66
    %125 = vmatprep.subr.mxu0 0.0
    %126 = vmatpush1.msra.mxu0 %v67
    %127 = vmatprep.subr.mxu0 0.0
    %128 = vmatpush1.msra.mxu0 %v68
    %129 = vmatprep.subr.mxu0 0.0
    %130 = vmatpush1.msra.mxu0 %v69
    %131 = vmatprep.subr.mxu0 0.0
    %132 = vmatpush1.msra.mxu0 %v70
    %133 = vmatprep.subr.mxu0 0.0
    %134 = vmatpush1.msra.mxu0 %v71
    %135 = vmatprep.subr.mxu0 0.0
    %136 = vmatpush1.msra.mxu0 %v72
    %137 = vmatprep.mubr.f32.mxu0 %v40
    %138 = vmatmul.mubr.f32.gmra.mrb[0].mxu0 %v39
    %v139 = vpop.f32.mrb[0].mxu0
    %v140 = vadd.f32 0.0, %v139
    %v141 = vpop.f32.mrb[0].mxu0
    %142 = vdwg.mxu0
    %v143 = vld [vmem:[%s8] sm:$0xff]
    %v144 = vld [vmem:[%s8 + $0x8] sm:$0xff]
    %v145 = vld [vmem:[%s8 + $0x10] sm:$0xff]
    %v146 = vld [vmem:[%s8 + $0x18] sm:$0xff]
    %v147 = vld [vmem:[%s8 + $0x20] sm:$0xff]
    %v148 = vld [vmem:[%s8 + $0x28] sm:$0xff]
    %v149 = vld [vmem:[%s8 + $0x30] sm:$0xff]
    %v150 = vld [vmem:[%s8 + $0x38] sm:$0xff]
    %v151 = vld [vmem:[%s8 + $0x40] sm:$0xff]
    %v152 = vld [vmem:[%s8 + $0x48] sm:$0xff]
    %v153 = vld [vmem:[%s8 + $0x50] sm:$0xff]
    %v154 = vld [vmem:[%s8 + $0x58] sm:$0xff]
    %v155 = vld [vmem:[%s8 + $0x60] sm:$0xff]
    %v156 = vld [vmem:[%s8 + $0x68] sm:$0xff]
    %v157 = vld [vmem:[%s8 + $0x70] sm:$0xff]
    %v158 = vld [vmem:[%s8 + $0x78] sm:$0xff]
    %v159 = vld [vmem:[%s8 + $0x80] sm:$0xff]
    %v160 = vld [vmem:[%s8 + $0x88] sm:$0xff]
    %v161 = vld [vmem:[%s8 + $0x90] sm:$0xff]
    %v162 = vld [vmem:[%s8 + $0x98] sm:$0xff]
    %v163 = vld [vmem:[%s8 + $0xa0] sm:$0xff]
    %v164 = vld [vmem:[%s8 + $0xa8] sm:$0xff]
    %v165 = vld [vmem:[%s8 + $0xb0] sm:$0xff]
    %v166 = vld [vmem:[%s8 + $0xb8] sm:$0xff]
    %v167 = vld [vmem:[%s8 + $0xc0] sm:$0xff]
    %v168 = vld [vmem:[%s8 + $0xc8] sm:$0xff]
    %v169 = vld [vmem:[%s8 + $0xd0] sm:$0xff]
    %v170 = vld [vmem:[%s8 + $0xd8] sm:$0xff]
    %v171 = vld [vmem:[%s8 + $0xe0] sm:$0xff]
    %v172 = vld [vmem:[%s8 + $0xe8] sm:$0xff]
    %v173 = vld [vmem:[%s8 + $0xf0] sm:$0xff]
    %v174 = vld [vmem:[%s8 + $0xf8] sm:$0xff]
    %175 = vmatprep.subr.mxu0 0.0
    %176 = vmatpush1.msra.mxu0 %v143
    %177 = vmatprep.subr.mxu0 0.0
    %178 = vmatpush1.msra.mxu0 %v144
    %179 = vmatprep.subr.mxu0 0.0
    %180 = vmatpush1.msra.mxu0 %v145
    %181 = vmatprep.subr.mxu0 0.0
    %182 = vmatpush1.msra.mxu0 %v146
    %183 = vmatprep.subr.mxu0 0.0
    %184 = vmatpush1.msra.mxu0 %v147
    %185 = vmatprep.subr.mxu0 0.0
    %186 = vmatpush1.msra.mxu0 %v148
    %187 = vmatprep.subr.mxu0 0.0
    %188 = vmatpush1.msra.mxu0 %v149
    %189 = vmatprep.subr.mxu0 0.0
    %190 = vmatpush1.msra.mxu0 %v150
    %191 = vmatprep.subr.mxu0 0.0
    %192 = vmatpush1.msra.mxu0 %v151
    %193 = vmatprep.subr.mxu0 0.0
    %194 = vmatpush1.msra.mxu0 %v152
    %195 = vmatprep.subr.mxu0 0.0
    %196 = vmatpush1.msra.mxu0 %v153
    %197 = vmatprep.subr.mxu0 0.0
    %198 = vmatpush1.msra.mxu0 %v154
    %199 = vmatprep.subr.mxu0 0.0
    %200 = vmatpush1.msra.mxu0 %v155
    %201 = vmatprep.subr.mxu0 0.0
    %202 = vmatpush1.msra.mxu0 %v156
    %203 = vmatprep.subr.mxu0 0.0
    %204 = vmatpush1.msra.mxu0 %v157
    %205 = vmatprep.subr.mxu0 0.0
    %206 = vmatpush1.msra.mxu0 %v158
    %207 = vmatprep.subr.mxu0 0.0
    %208 = vmatpush1.msra.mxu0 %v159
    %209 = vmatprep.subr.mxu0 0.0
    %210 = vmatpush1.msra.mxu0 %v160
    %211 = vmatprep.subr.mxu0 0.0
    %212 = vmatpush1.msra.mxu0 %v161
    %213 = vmatprep.subr.mxu0 0.0
    %214 = vmatpush1.msra.mxu0 %v162
    %215 = vmatprep.subr.mxu0 0.0
    %216 = vmatpush1.msra.mxu0 %v163
    %217 = vmatprep.subr.mxu0 0.0
    %218 = vmatpush1.msra.mxu0 %v164
    %219 = vmatprep.subr.mxu0 0.0
    %220 = vmatpush1.msra.mxu0 %v165
    %221 = vmatprep.subr.mxu0 0.0
    %222 = vmatpush1.msra.mxu0 %v166
    %223 = vmatprep.subr.mxu0 0.0
    %224 = vmatpush1.msra.mxu0 %v167
    %225 = vmatprep.subr.mxu0 0.0
    %226 = vmatpush1.msra.mxu0 %v168
    %227 = vmatprep.subr.mxu0 0.0
    %228 = vmatpush1.msra.mxu0 %v169
    %229 = vmatprep.subr.mxu0 0.0
    %230 = vmatpush1.msra.mxu0 %v170
    %231 = vmatprep.subr.mxu0 0.0
    %232 = vmatpush1.msra.mxu0 %v171
    %233 = vmatprep.subr.mxu0 0.0
    %234 = vmatpush1.msra.mxu0 %v172
    %235 = vmatprep.subr.mxu0 0.0
    %236 = vmatpush1.msra.mxu0 %v173
    %237 = vmatprep.subr.mxu0 0.0
    %238 = vmatpush1.msra.mxu0 %v174
    %239 = vmatprep.mubr.f32.mxu0 %v40
    %240 = vmatmul.mubr.f32.gmra.mrb[0].mxu0 %v39
    %v241 = vpop.f32.mrb[0].mxu0
    %v242 = vadd.f32 0.0, %v241
    %v243 = vpop.f32.mrb[0].mxu0
    %244 = vdwg.mxu0
    %v245 = vld [vmem:[%s1] sm:$0xff]
    %v246 = vld [vmem:[%s1 + $0x8] sm:$0xff]
    %v247 = vld [vmem:[%s2] sm:$0xff]
    %v248 = vld [vmem:[%s2 + $0x8] sm:$0xff]
    %250 = vset.pattern.permute.xlu0 0
    %251 = vperm.xlu0 %250, %v247
    %v252 = vpop.permute.xlu0 %251
    %255 = vset.pattern.permute.xlu0 0
    %256 = vperm.xlu0 %255, %v248
    %v257 = vpop.permute.xlu0 %256
    %vm259 = vcmask 64512
    %v261 = vsel %vm259, %v245, 0
    %v264 = vsel %vm259, %v246, 0
    %266 = vmatprep.subr.mxu0 0.0
    %267 = vmatpush1.msra.mxu0 %v140
    %268 = vmatprep.subr.mxu0 0.0
    %269 = vmatpush1.msra.mxu0 0.0
    %270 = vmatprep.subr.mxu0 0.0
    %271 = vmatpush1.msra.mxu0 0.0
    %272 = vmatprep.subr.mxu0 0.0
    %273 = vmatpush1.msra.mxu0 0.0
    %274 = vmatprep.subr.mxu0 0.0
    %275 = vmatpush1.msra.mxu0 0.0
    %276 = vmatprep.subr.mxu0 0.0
    %277 = vmatpush1.msra.mxu0 0.0
    %278 = vmatprep.subr.mxu0 0.0
    %279 = vmatpush1.msra.mxu0 0.0
    %280 = vmatprep.subr.mxu0 0.0
    %281 = vmatpush1.msra.mxu0 0.0
    %282 = vmatprep.subr.mxu0 0.0
    %283 = vmatpush1.msra.mxu0 0.0
    %284 = vmatprep.subr.mxu0 0.0
    %285 = vmatpush1.msra.mxu0 0.0
    %286 = vmatprep.subr.mxu0 0.0
    %287 = vmatpush1.msra.mxu0 0.0
    %288 = vmatprep.subr.mxu0 0.0
    %289 = vmatpush1.msra.mxu0 0.0
    %290 = vmatprep.subr.mxu0 0.0
    %291 = vmatpush1.msra.mxu0 0.0
    %292 = vmatprep.subr.mxu0 0.0
    %293 = vmatpush1.msra.mxu0 0.0
    %294 = vmatprep.subr.mxu0 0.0
    %295 = vmatpush1.msra.mxu0 0.0
    %296 = vmatprep.subr.mxu0 0.0
    %297 = vmatpush1.msra.mxu0 0.0
    %298 = vmatprep.subr.mxu0 0.0
    %299 = vmatpush1.msra.mxu0 0.0
    %300 = vmatprep.subr.mxu0 0.0
    %301 = vmatpush1.msra.mxu0 0.0
    %302 = vmatprep.subr.mxu0 0.0
    %303 = vmatpush1.msra.mxu0 0.0
    %304 = vmatprep.subr.mxu0 0.0
    %305 = vmatpush1.msra.mxu0 0.0
    %306 = vmatprep.subr.mxu0 0.0
    %307 = vmatpush1.msra.mxu0 0.0
    %308 = vmatprep.subr.mxu0 0.0
    %309 = vmatpush1.msra.mxu0 0.0
    %310 = vmatprep.subr.mxu0 0.0
    %311 = vmatpush1.msra.mxu0 0.0
    %312 = vmatprep.subr.mxu0 0.0
    %313 = vmatpush1.msra.mxu0 0.0
    %314 = vmatprep.subr.mxu0 0.0
    %315 = vmatpush1.msra.mxu0 0.0
    %316 = vmatprep.subr.mxu0 0.0
    %317 = vmatpush1.msra.mxu0 0.0
    %318 = vmatprep.subr.mxu0 0.0
    %319 = vmatpush1.msra.mxu0 0.0
    %320 = vmatprep.subr.mxu0 0.0
    %321 = vmatpush1.msra.mxu0 0.0
    %322 = vmatprep.subr.mxu0 0.0
    %323 = vmatpush1.msra.mxu0 0.0
    %324 = vmatprep.subr.mxu0 0.0
    %325 = vmatpush1.msra.mxu0 0.0
    %326 = vmatprep.subr.mxu0 0.0
    %327 = vmatpush1.msra.mxu0 0.0
    %328 = vmatprep.subr.mxu0 0.0
    %329 = vmatpush1.msra.mxu0 0.0
    %330 = vmatprep.mubr.f32.mxu0 0.0
    %331 = vmatmul.mubr.f32.gmra.mrb[0].mxu0 %v261
    %v332 = vpop.f32.mrb[0].mxu0
    %v333 = vadd.f32 %v252, %v332
    %v334 = vpop.f32.mrb[0].mxu0
    %335 = vmatprep.mubr.f32.mxu0 0.0
    %336 = vmatmul.mubr.f32.gmra.mrb[0].mxu0 %v264
    %v337 = vpop.f32.mrb[0].mxu0
    %v338 = vadd.f32 %v257, %v337
    %v339 = vpop.f32.mrb[0].mxu0
    %340 = vdwg.mxu0
    %341 = vmatprep.subr.mxu0 0.0
    %342 = vmatpush1.msra.mxu0 %v242
    %343 = vmatprep.subr.mxu0 0.0
    %344 = vmatpush1.msra.mxu0 0.0
    %345 = vmatprep.subr.mxu0 0.0
    %346 = vmatpush1.msra.mxu0 0.0
    %347 = vmatprep.subr.mxu0 0.0
    %348 = vmatpush1.msra.mxu0 0.0
    %349 = vmatprep.subr.mxu0 0.0
    %350 = vmatpush1.msra.mxu0 0.0
    %351 = vmatprep.subr.mxu0 0.0
    %352 = vmatpush1.msra.mxu0 0.0
    %353 = vmatprep.subr.mxu0 0.0
    %354 = vmatpush1.msra.mxu0 0.0
    %355 = vmatprep.subr.mxu0 0.0
    %356 = vmatpush1.msra.mxu0 0.0
    %357 = vmatprep.subr.mxu0 0.0
    %358 = vmatpush1.msra.mxu0 0.0
    %359 = vmatprep.subr.mxu0 0.0
    %360 = vmatpush1.msra.mxu0 0.0
    %361 = vmatprep.subr.mxu0 0.0
    %362 = vmatpush1.msra.mxu0 0.0
    %363 = vmatprep.subr.mxu0 0.0
    %364 = vmatpush1.msra.mxu0 0.0
    %365 = vmatprep.subr.mxu0 0.0
    %366 = vmatpush1.msra.mxu0 0.0
    %367 = vmatprep.subr.mxu0 0.0
    %368 = vmatpush1.msra.mxu0 0.0
    %369 = vmatprep.subr.mxu0 0.0
    %370 = vmatpush1.msra.mxu0 0.0
    %371 = vmatprep.subr.mxu0 0.0
    %372 = vmatpush1.msra.mxu0 0.0
    %373 = vmatprep.subr.mxu0 0.0
    %374 = vmatpush1.msra.mxu0 0.0
    %375 = vmatprep.subr.mxu0 0.0
    %376 = vmatpush1.msra.mxu0 0.0
    %377 = vmatprep.subr.mxu0 0.0
    %378 = vmatpush1.msra.mxu0 0.0
    %379 = vmatprep.subr.mxu0 0.0
    %380 = vmatpush1.msra.mxu0 0.0
    %381 = vmatprep.subr.mxu0 0.0
    %382 = vmatpush1.msra.mxu0 0.0
    %383 = vmatprep.subr.mxu0 0.0
    %384 = vmatpush1.msra.mxu0 0.0
    %385 = vmatprep.subr.mxu0 0.0
    %386 = vmatpush1.msra.mxu0 0.0
    %387 = vmatprep.subr.mxu0 0.0
    %388 = vmatpush1.msra.mxu0 0.0
    %389 = vmatprep.subr.mxu0 0.0
    %390 = vmatpush1.msra.mxu0 0.0
    %391 = vmatprep.subr.mxu0 0.0
    %392 = vmatpush1.msra.mxu0 0.0
    %393 = vmatprep.subr.mxu0 0.0
    %394 = vmatpush1.msra.mxu0 0.0
    %395 = vmatprep.subr.mxu0 0.0
    %396 = vmatpush1.msra.mxu0 0.0
    %397 = vmatprep.subr.mxu0 0.0
    %398 = vmatpush1.msra.mxu0 0.0
    %399 = vmatprep.subr.mxu0 0.0
    %400 = vmatpush1.msra.mxu0 0.0
    %401 = vmatprep.subr.mxu0 0.0
    %402 = vmatpush1.msra.mxu0 0.0
    %403 = vmatprep.subr.mxu0 0.0
    %404 = vmatpush1.msra.mxu0 0.0
    %405 = vmatprep.mubr.f32.mxu0 0.0
    %406 = vmatmul.mubr.f32.gmra.mrb[0].mxu0 %v261
    %v407 = vpop.f32.mrb[0].mxu0
    %v408 = vadd.f32 %v252, %v407
    %v409 = vpop.f32.mrb[0].mxu0
    %410 = vmatprep.mubr.f32.mxu0 0.0
    %411 = vmatmul.mubr.f32.gmra.mrb[0].mxu0 %v264
    %v412 = vpop.f32.mrb[0].mxu0
    %v413 = vadd.f32 %v257, %v412
    %v414 = vpop.f32.mrb[0].mxu0
    %415 = vdwg.mxu0
    %v416 = vadd.f32 %v333, 3.0
    %v417 = vadd.f32 %v338, 3.0
    %v418 = vmax.f32 %v416, 0.0
    %v419 = vmax.f32 %v417, 0.0
    %v420 = vmin.f32 %v418, 6.0
    %v421 = vmin.f32 %v419, 6.0
    %v422 = vmul.f32 %v420, 0.16666667
    %v423 = vmul.f32 %v421, 0.16666667
    %v424 = vmul.f32 %v333, %v422
    %v425 = vmul.f32 %v338, %v423
    %v426 = vadd.f32 %v408, 3.0
    %v427 = vadd.f32 %v413, 3.0
    %v428 = vmax.f32 %v426, 0.0
    %v429 = vmax.f32 %v427, 0.0
    %v430 = vmin.f32 %v428, 6.0
    %v431 = vmin.f32 %v429, 6.0
    %v432 = vmul.f32 %v430, 0.16666667
    %v433 = vmul.f32 %v431, 0.16666667
    %v434 = vmul.f32 %v408, %v432
    %v435 = vmul.f32 %v413, %v433
    %v436 = vld [vmem:[%s3] sm:$0xff]
    %v437 = vld [vmem:[%s4] sm:$0xff]
    %439 = vset.pattern.permute.xlu0 0
    %440 = vperm.xlu0 %439, %v437
    %v441 = vpop.permute.xlu0 %440
    %vm443 = vcmask 130048
    %v445 = vsel %vm443, %v436, 0
    %447 = vmatprep.subr.mxu0 0.0
    %448 = vmatpush1.msra.mxu0 %v424
    %449 = vmatprep.subr.mxu0 0.0
    %450 = vmatpush1.msra.mxu0 %v425
    %451 = vmatprep.subr.mxu0 0.0
    %452 = vmatpush1.msra.mxu0 0.0
    %453 = vmatprep.subr.mxu0 0.0
    %454 = vmatpush1.msra.mxu0 0.0
    %455 = vmatprep.subr.mxu0 0.0
    %456 = vmatpush1.msra.mxu0 0.0
    %457 = vmatprep.subr.mxu0 0.0
    %458 = vmatpush1.msra.mxu0 0.0
    %459 = vmatprep.subr.mxu0 0.0
    %460 = vmatpush1.msra.mxu0 0.0
    %461 = vmatprep.subr.mxu0 0.0
    %462 = vmatpush1.msra.mxu0 0.0
    %463 = vmatprep.subr.mxu0 0.0
    %464 = vmatpush1.msra.mxu0 0.0
    %465 = vmatprep.subr.mxu0 0.0
    %466 = vmatpush1.msra.mxu0 0.0
    %467 = vmatprep.subr.mxu0 0.0
    %468 = vmatpush1.msra.mxu0 0.0
    %469 = vmatprep.subr.mxu0 0.0
    %470 = vmatpush1.msra.mxu0 0.0
    %471 = vmatprep.subr.mxu0 0.0
    %472 = vmatpush1.msra.mxu0 0.0
    %473 = vmatprep.subr.mxu0 0.0
    %474 = vmatpush1.msra.mxu0 0.0
    %475 = vmatprep.subr.mxu0 0.0
    %476 = vmatpush1.msra.mxu0 0.0
    %477 = vmatprep.subr.mxu0 0.0
    %478 = vmatpush1.msra.mxu0 0.0
    %479 = vmatprep.subr.mxu0 0.0
    %480 = vmatpush1.msra.mxu0 0.0
    %481 = vmatprep.subr.mxu0 0.0
    %482 = vmatpush1.msra.mxu0 0.0
    %483 = vmatprep.subr.mxu0 0.0
    %484 = vmatpush1.msra.mxu0 0.0
    %485 = vmatprep.subr.mxu0 0.0
    %486 = vmatpush1.msra.mxu0 0.0
    %487 = vmatprep.subr.mxu0 0.0
    %488 = vmatpush1.msra.mxu0 0.0
    %489 = vmatprep.subr.mxu0 0.0
    %490 = vmatpush1.msra.mxu0 0.0
    %491 = vmatprep.subr.mxu0 0.0
    %492 = vmatpush1.msra.mxu0 0.0
    %493 = vmatprep.subr.mxu0 0.0
    %494 = vmatpush1.msra.mxu0 0.0
    %495 = vmatprep.subr.mxu0 0.0
    %496 = vmatpush1.msra.mxu0 0.0
    %497 = vmatprep.subr.mxu0 0.0
    %498 = vmatpush1.msra.mxu0 0.0
    %499 = vmatprep.subr.mxu0 0.0
    %500 = vmatpush1.msra.mxu0 0.0
    %501 = vmatprep.subr.mxu0 0.0
    %502 = vmatpush1.msra.mxu0 0.0
    %503 = vmatprep.subr.mxu0 0.0
    %504 = vmatpush1.msra.mxu0 0.0
    %505 = vmatprep.subr.mxu0 0.0
    %506 = vmatpush1.msra.mxu0 0.0
    %507 = vmatprep.subr.mxu0 0.0
    %508 = vmatpush1.msra.mxu0 0.0
    %509 = vmatprep.subr.mxu0 0.0
    %510 = vmatpush1.msra.mxu0 0.0
    %511 = vmatprep.mubr.f32.mxu0 0.0
    %512 = vmatmul.mubr.f32.gmra.mrb[0].mxu0 %v445
    %v513 = vpop.f32.mrb[0].mxu0
    %v514 = vadd.f32 %v441, %v513
    %v515 = vpop.f32.mrb[0].mxu0
    %516 = vdwg.mxu0
    %v517 = vxor.u32 %v514, 2147483648
    %v518 = vmul.f32 %v517, 1.442695
    %v519 = vpow.pop %v518
    %v520 = vadd.f32 %v519, 1.0
    %v521 = vrcp.pop %v520
    %v522 = vmul.f32 1.0, %v521
    %v523 = vld [vmem:[%s5] sm:$0xff]
    %v524 = vld [vmem:[%s6] sm:$0xff]
    %526 = vset.pattern.permute.xlu0 0
    %527 = vperm.xlu0 %526, %v524
    %v528 = vpop.permute.xlu0 %527
    %v531 = vsel %vm443, %v523, 0
    %533 = vmatprep.subr.mxu0 0.0
    %534 = vmatpush1.msra.mxu0 %v434
    %535 = vmatprep.subr.mxu0 0.0
    %536 = vmatpush1.msra.mxu0 %v435
    %537 = vmatprep.subr.mxu0 0.0
    %538 = vmatpush1.msra.mxu0 0.0
    %539 = vmatprep.subr.mxu0 0.0
    %540 = vmatpush1.msra.mxu0 0.0
    %541 = vmatprep.subr.mxu0 0.0
    %542 = vmatpush1.msra.mxu0 0.0
    %543 = vmatprep.subr.mxu0 0.0
    %544 = vmatpush1.msra.mxu0 0.0
    %545 = vmatprep.subr.mxu0 0.0
    %546 = vmatpush1.msra.mxu0 0.0
    %547 = vmatprep.subr.mxu0 0.0
    %548 = vmatpush1.msra.mxu0 0.0
    %549 = vmatprep.subr.mxu0 0.0
    %550 = vmatpush1.msra.mxu0 0.0
    %551 = vmatprep.subr.mxu0 0.0
    %552 = vmatpush1.msra.mxu0 0.0
    %553 = vmatprep.subr.mxu0 0.0
    %554 = vmatpush1.msra.mxu0 0.0
    %555 = vmatprep.subr.mxu0 0.0
    %556 = vmatpush1.msra.mxu0 0.0
    %557 = vmatprep.subr.mxu0 0.0
    %558 = vmatpush1.msra.mxu0 0.0
    %559 = vmatprep.subr.mxu0 0.0
    %560 = vmatpush1.msra.mxu0 0.0
    %561 = vmatprep.subr.mxu0 0.0
    %562 = vmatpush1.msra.mxu0 0.0
    %563 = vmatprep.subr.mxu0 0.0
    %564 = vmatpush1.msra.mxu0 0.0
    %565 = vmatprep.subr.mxu0 0.0
    %566 = vmatpush1.msra.mxu0 0.0
    %567 = vmatprep.subr.mxu0 0.0
    %568 = vmatpush1.msra.mxu0 0.0
    %569 = vmatprep.subr.mxu0 0.0
    %570 = vmatpush1.msra.mxu0 0.0
    %571 = vmatprep.subr.mxu0 0.0
    %572 = vmatpush1.msra.mxu0 0.0
    %573 = vmatprep.subr.mxu0 0.0
    %574 = vmatpush1.msra.mxu0 0.0
    %575 = vmatprep.subr.mxu0 0.0
    %576 = vmatpush1.msra.mxu0 0.0
    %577 = vmatprep.subr.mxu0 0.0
    %578 = vmatpush1.msra.mxu0 0.0
    %579 = vmatprep.subr.mxu0 0.0
    %580 = vmatpush1.msra.mxu0 0.0
    %581 = vmatprep.subr.mxu0 0.0
    %582 = vmatpush1.msra.mxu0 0.0
    %583 = vmatprep.subr.mxu0 0.0
    %584 = vmatpush1.msra.mxu0 0.0
    %585 = vmatprep.subr.mxu0 0.0
    %586 = vmatpush1.msra.mxu0 0.0
    %587 = vmatprep.subr.mxu0 0.0
    %588 = vmatpush1.msra.mxu0 0.0
    %589 = vmatprep.subr.mxu0 0.0
    %590 = vmatpush1.msra.mxu0 0.0
    %591 = vmatprep.subr.mxu0 0.0
    %592 = vmatpush1.msra.mxu0 0.0
    %593 = vmatprep.subr.mxu0 0.0
    %594 = vmatpush1.msra.mxu0 0.0
    %595 = vmatprep.subr.mxu0 0.0
    %596 = vmatpush1.msra.mxu0 0.0
    %597 = vmatprep.mubr.f32.mxu0 0.0
    %598 = vmatmul.mubr.f32.gmra.mrb[0].mxu0 %v531
    %v599 = vpop.f32.mrb[0].mxu0
    %v600 = vadd.f32 %v528, %v599
    %v601 = vpop.f32.mrb[0].mxu0
    %602 = vdwg.mxu0
    %v603 = vxor.u32 %v600, 2147483648
    %v604 = vmul.f32 %v603, 1.442695
    %v605 = vpow.pop %v604
    %v606 = vadd.f32 %v605, 1.0
    %v607 = vrcp.pop %v606
    %v608 = vmul.f32 1.0, %v607
    %v609 = vld [vmem:[%s9] sm:$0xff]
    %v610 = vld [vmem:[%s9 + $0x8] sm:$0xff]
    %v611 = vld [vmem:[%s9 + $0x10] sm:$0xff]
    %v612 = vld [vmem:[%s9 + $0x18] sm:$0xff]
    %v614 = vsel %vm443, %v522, 0
    %616 = vmatprep.subr.mxu0 %v610
    %617 = vmatpush1.msra.mxu0 %v609
    %618 = vmatprep.subr.mxu0 %v612
    %619 = vmatpush1.msra.mxu0 %v611
    %620 = vmatprep.subr.mxu0 0.0
    %621 = vmatpush1.msra.mxu0 0.0
    %622 = vmatprep.subr.mxu0 0.0
    %623 = vmatpush1.msra.mxu0 0.0
    %624 = vmatprep.subr.mxu0 0.0
    %625 = vmatpush1.msra.mxu0 0.0
    %626 = vmatprep.subr.mxu0 0.0
    %627 = vmatpush1.msra.mxu0 0.0
    %628 = vmatprep.subr.mxu0 0.0
    %629 = vmatpush1.msra.mxu0 0.0
    %630 = vmatprep.subr.mxu0 0.0
    %631 = vmatpush1.msra.mxu0 0.0
    %632 = vmatprep.subr.mxu0 0.0
    %633 = vmatpush1.msra.mxu0 0.0
    %634 = vmatprep.subr.mxu0 0.0
    %635 = vmatpush1.msra.mxu0 0.0
    %636 = vmatprep.subr.mxu0 0.0
    %637 = vmatpush1.msra.mxu0 0.0
    %638 = vmatprep.subr.mxu0 0.0
    %639 = vmatpush1.msra.mxu0 0.0
    %640 = vmatprep.subr.mxu0 0.0
    %641 = vmatpush1.msra.mxu0 0.0
    %642 = vmatprep.subr.mxu0 0.0
    %643 = vmatpush1.msra.mxu0 0.0
    %644 = vmatprep.subr.mxu0 0.0
    %645 = vmatpush1.msra.mxu0 0.0
    %646 = vmatprep.subr.mxu0 0.0
    %647 = vmatpush1.msra.mxu0 0.0
    %648 = vmatprep.subr.mxu0 0.0
    %649 = vmatpush1.msra.mxu0 0.0
    %650 = vmatprep.subr.mxu0 0.0
    %651 = vmatpush1.msra.mxu0 0.0
    %652 = vmatprep.subr.mxu0 0.0
    %653 = vmatpush1.msra.mxu0 0.0
    %654 = vmatprep.subr.mxu0 0.0
    %655 = vmatpush1.msra.mxu0 0.0
    %656 = vmatprep.subr.mxu0 0.0
    %657 = vmatpush1.msra.mxu0 0.0
    %658 = vmatprep.subr.mxu0 0.0
    %659 = vmatpush1.msra.mxu0 0.0
    %660 = vmatprep.subr.mxu0 0.0
    %661 = vmatpush1.msra.mxu0 0.0
    %662 = vmatprep.subr.mxu0 0.0
    %663 = vmatpush1.msra.mxu0 0.0
    %664 = vmatprep.subr.mxu0 0.0
    %665 = vmatpush1.msra.mxu0 0.0
    %666 = vmatprep.subr.mxu0 0.0
    %667 = vmatpush1.msra.mxu0 0.0
    %668 = vmatprep.subr.mxu0 0.0
    %669 = vmatpush1.msra.mxu0 0.0
    %670 = vmatprep.subr.mxu0 0.0
    %671 = vmatpush1.msra.mxu0 0.0
    %672 = vmatprep.subr.mxu0 0.0
    %673 = vmatpush1.msra.mxu0 0.0
    %674 = vmatprep.subr.mxu0 0.0
    %675 = vmatpush1.msra.mxu0 0.0
    %676 = vmatprep.subr.mxu0 0.0
    %677 = vmatpush1.msra.mxu0 0.0
    %678 = vmatprep.subr.mxu0 0.0
    %679 = vmatpush1.msra.mxu0 0.0
    %680 = vmatprep.mubr.f32.mxu0 0.0
    %681 = vmatmul.mubr.f32.gmra.mrb[0].mxu0 %v614
    %v682 = vpop.f32.mrb[0].mxu0
    %v683 = vadd.f32 0.0, %v682
    %v684 = vpop.f32.mrb[0].mxu0
    %v685 = vadd.f32 0.0, %v684
    %686 = vdwg.mxu0
    %v687 = vld [vmem:[%s10] sm:$0xff]
    %v688 = vld [vmem:[%s10 + $0x8] sm:$0xff]
    %v689 = vld [vmem:[%s10 + $0x10] sm:$0xff]
    %v690 = vld [vmem:[%s10 + $0x18] sm:$0xff]
    %v692 = vsel %vm443, %v608, 0
    %694 = vmatprep.subr.mxu0 %v688
    %695 = vmatpush1.msra.mxu0 %v687
    %696 = vmatprep.subr.mxu0 %v690
    %697 = vmatpush1.msra.mxu0 %v689
    %698 = vmatprep.subr.mxu0 0.0
    %699 = vmatpush1.msra.mxu0 0.0
    %700 = vmatprep.subr.mxu0 0.0
    %701 = vmatpush1.msra.mxu0 0.0
    %702 = vmatprep.subr.mxu0 0.0
    %703 = vmatpush1.msra.mxu0 0.0
    %704 = vmatprep.subr.mxu0 0.0
    %705 = vmatpush1.msra.mxu0 0.0
    %706 = vmatprep.subr.mxu0 0.0
    %707 = vmatpush1.msra.mxu0 0.0
    %708 = vmatprep.subr.mxu0 0.0
    %709 = vmatpush1.msra.mxu0 0.0
    %710 = vmatprep.subr.mxu0 0.0
    %711 = vmatpush1.msra.mxu0 0.0
    %712 = vmatprep.subr.mxu0 0.0
    %713 = vmatpush1.msra.mxu0 0.0
    %714 = vmatprep.subr.mxu0 0.0
    %715 = vmatpush1.msra.mxu0 0.0
    %716 = vmatprep.subr.mxu0 0.0
    %717 = vmatpush1.msra.mxu0 0.0
    %718 = vmatprep.subr.mxu0 0.0
    %719 = vmatpush1.msra.mxu0 0.0
    %720 = vmatprep.subr.mxu0 0.0
    %721 = vmatpush1.msra.mxu0 0.0
    %722 = vmatprep.subr.mxu0 0.0
    %723 = vmatpush1.msra.mxu0 0.0
    %724 = vmatprep.subr.mxu0 0.0
    %725 = vmatpush1.msra.mxu0 0.0
    %726 = vmatprep.subr.mxu0 0.0
    %727 = vmatpush1.msra.mxu0 0.0
    %728 = vmatprep.subr.mxu0 0.0
    %729 = vmatpush1.msra.mxu0 0.0
    %730 = vmatprep.subr.mxu0 0.0
    %731 = vmatpush1.msra.mxu0 0.0
    %732 = vmatprep.subr.mxu0 0.0
    %733 = vmatpush1.msra.mxu0 0.0
    %734 = vmatprep.subr.mxu0 0.0
    %735 = vmatpush1.msra.mxu0 0.0
    %736 = vmatprep.subr.mxu0 0.0
    %737 = vmatpush1.msra.mxu0 0.0
    %738 = vmatprep.subr.mxu0 0.0
    %739 = vmatpush1.msra.mxu0 0.0
    %740 = vmatprep.subr.mxu0 0.0
    %741 = vmatpush1.msra.mxu0 0.0
    %742 = vmatprep.subr.mxu0 0.0
    %743 = vmatpush1.msra.mxu0 0.0
    %744 = vmatprep.subr.mxu0 0.0
    %745 = vmatpush1.msra.mxu0 0.0
    %746 = vmatprep.subr.mxu0 0.0
    %747 = vmatpush1.msra.mxu0 0.0
    %748 = vmatprep.subr.mxu0 0.0
    %749 = vmatpush1.msra.mxu0 0.0
    %750 = vmatprep.subr.mxu0 0.0
    %751 = vmatpush1.msra.mxu0 0.0
    %752 = vmatprep.subr.mxu0 0.0
    %753 = vmatpush1.msra.mxu0 0.0
    %754 = vmatprep.subr.mxu0 0.0
    %755 = vmatpush1.msra.mxu0 0.0
    %756 = vmatprep.subr.mxu0 0.0
    %757 = vmatpush1.msra.mxu0 0.0
    %758 = vmatprep.mubr.f32.mxu0 0.0
    %759 = vmatmul.mubr.f32.gmra.mrb[0].mxu0 %v692
    %v760 = vpop.f32.mrb[0].mxu0
    %v761 = vadd.f32 0.0, %v760
    %v762 = vpop.f32.mrb[0].mxu0
    %v763 = vadd.f32 0.0, %v762
    %764 = vdwg.mxu0
    %v765 = vmul.f32 %v683, %v761
    %v766 = vmul.f32 %v685, %v763
    %v767 = vmul.f32 %v39, %v765
    %v768 = vmul.f32 %v40, %v766
    %769 = vst [vmem:[#allocation2] sm:$0xff] %v767
    %770 = vst [vmem:[#allocation2 + $0x8] sm:$0xff] %v768
    // Predicated region
    $region46: #{tpu_custom_call.1} parent=1 // pred_check
      _
    $region47: #{tpu_custom_call.1} parent=1 // pred_check_branch
      %772 = sbr.rel (0) target = $region49
    $region48: #{tpu_custom_call.1} parent=1 // pred_region
      %s774 = ssub.s32 256, 256
      %775 = vsyncadd [#allocation3], %s774
      %s777 = sshll.u32 [#allocation2], 4
      %s778 = int_to_ptr.vmem [resolvable:$true] %s777
      %780 = dma.vmem_to_hbm [thread:$0]  %s778, 256, %s11, [#allocation3]
    $region49: #{tpu_custom_call.1} parent=1 // pred_fallthru
      _
    // Predicated region
    $region50: #{tpu_custom_call.1} parent=1 // pred_check
      _
    $region51: #{tpu_custom_call.1} parent=1 // pred_check_branch
      %782 = sbr.rel (0) target = $region53
    $region52: #{tpu_custom_call.1} parent=1 // pred_region
      %783 = dma.done [#allocation3], 256
    $region53: #{tpu_custom_call.1} parent=1 // pred_fallthru
      _
    %784 = vsyncpa [#allocation3], 1

</llo_original>
